<compile_context>
chip_gen: v5e
topology: v5e:2x2
jax: 0.10.0
libtpu: 0.0.40
codegen_flags: <defaults>
</compile_context>

<pallas_src>
import functools
import math

import jax
import jax.numpy as jnp
from jax.experimental import pallas as pl
from jax.experimental.pallas import tpu as pltpu


def _instancenorm_kernel(x_ref, scale_ref, shift_ref, o_ref, *, eps, inv_s):
    # x_ref: (ROWS_TILE, S); scale_ref / shift_ref: (ROWS_TILE, 1) f32.
    x = x_ref[...].astype(jnp.float32)

    # Single-pass statistics: one XLU reduction chain each, tiny scalar scale
    # by the compile-time constant 1/S instead of two full-width divides.
    s1 = jnp.sum(x, axis=-1, keepdims=True)        # (R, 1)
    s2 = jnp.sum(x * x, axis=-1, keepdims=True)    # (R, 1)
    mean = s1 * inv_s
    var = s2 * inv_s - mean * mean
    var = jnp.maximum(var, 0.0)                    # guard against cancellation
    rstd = jax.lax.rsqrt(var + eps)

    # Fold the affine scale into the rstd factor: one mul-add on the big tile.
    g = scale_ref[...] * rstd                      # (R, 1)
    out = (x - mean) * g + shift_ref[...]
    o_ref[...] = out.astype(o_ref.dtype)


def instance_norm(x, scale, shift, *, eps=1e-5, block_bytes=2 << 20):
    """InstanceNorm forward. x: (B, C, *spatial); scale/shift: (C,)."""
    x_shape = x.shape
    B, C = x_shape[0], x_shape[1]
    S = math.prod(x_shape[2:]) if len(x_shape) > 2 else 1
    R = B * C

    # 2D view: one row per (sample, channel).
    x2 = x.reshape(R, S)

    # Per-row affine params, kept in f32 (no precision loss vs PyTorch).
    scale_r = jnp.broadcast_to(
        scale.astype(jnp.float32)[None, :], (B, C)).reshape(R, 1)
    shift_r = jnp.broadcast_to(
        shift.astype(jnp.float32)[None, :], (B, C)).reshape(R, 1)

    # Row tile: multiple of 8 sublanes, capped so one f32 block stays at a few
    # MiB (double-buffered in+out comfortably fits v7x's 64 MiB VMEM while
    # still amortizing per-grid-step overhead on v5e/v6e).
    bytes_per_row = S * 4
    rows_fit = max(1, block_bytes // max(1, bytes_per_row))
    rows_tile = max(8, (rows_fit // 8) * 8)
    rows_tile = min(rows_tile, ((R + 7) // 8) * 8)   # don't over-pad tiny inputs

    # Pad rows so the grid divides evenly (padded rows are all-zero -> finite
    # math -> discarded on the slice back).
    r_pad = pl.cdiv(R, rows_tile) * rows_tile
    if r_pad != R:
        pad = r_pad - R
        x2 = jnp.pad(x2, ((0, pad), (0, 0)))
        scale_r = jnp.pad(scale_r, ((0, pad), (0, 0)))
        shift_r = jnp.pad(shift_r, ((0, pad), (0, 0)))

    # TODO(synk): if a single (8, S) f32 row-block ever exceeds the VMEM budget
    # (extremely large S), add an 'arbitrary' S grid axis with two-phase
    # stats-accumulate + normalize instead of a single resident row.

    kernel = functools.partial(_instancenorm_kernel, eps=eps, inv_s=1.0 / S)
    grid = (r_pad // rows_tile,)

    out = pl.pallas_call(
        kernel,
        out_shape=jax.ShapeDtypeStruct((r_pad, S), x.dtype),
        grid_spec=pltpu.PrefetchScalarGridSpec(
            num_scalar_prefetch=0,
            grid=grid,
            in_specs=[
                pl.BlockSpec((rows_tile, S), lambda r: (r, 0)),
                pl.BlockSpec((rows_tile, 1), lambda r: (r, 0)),
                pl.BlockSpec((rows_tile, 1), lambda r: (r, 0)),
            ],
            out_specs=pl.BlockSpec((rows_tile, S), lambda r: (r, 0)),
        ),
        compiler_params=pltpu.CompilerParams(
            dimension_semantics=("parallel",),
        ),
    )(x2, scale_r, shift_r)

    return out[:R].reshape(x_shape)


def _reference_instance_norm(x, scale, shift, *, eps=1e-5):
    B, C = x.shape[0], x.shape[1]
    x3 = x.reshape(B, C, -1).astype(jnp.float32)
    mean = jnp.mean(x3, axis=-1, keepdims=True)
    var = jnp.mean(x3 * x3, axis=-1, keepdims=True) - mean * mean
    xn = (x3 - mean) / jnp.sqrt(var + eps)
    xn = scale.reshape(1, C, 1) * xn + shift.reshape(1, C, 1)
    return xn.reshape(x.shape).astype(x.dtype)


if __name__ == "__main__":
    key = jax.random.PRNGKey(0)
    B, C, H, W = 2, 4, 16, 16
    x = jax.random.normal(key, (B, C, H, W), dtype=jnp.float32)

    # Deterministic parameter init, matching nn.Parameter(torch.ones/zeros(channels)).
    scale = jnp.ones((C,), dtype=jnp.float32)
    shift = jnp.zeros((C,), dtype=jnp.float32)

    out = instance_norm(x, scale, shift, eps=1e-5)
    out = jax.block_until_ready(out)

    ref = _reference_instance_norm(x, scale, shift, eps=1e-5)
    assert out.shape == x.shape
    assert jnp.allclose(out, ref, atol=1e-4, rtol=1e-4)

    # track_running_stats=False in the reference config, so the eval-mode
    # running-stats path is never exercised; only batch statistics are needed.
    print("KERNEL_OK")
</pallas_src>

<mosaic_0001>
module attributes {stable_mosaic.version = 11 : i64} {
  func.func @_instancenorm_kernel(%arg0: i32, %arg1: memref<8x256xf32, #tpu.memory_space<vmem>>, %arg2: memref<8x1xf32, #tpu.memory_space<vmem>>, %arg3: memref<8x1xf32, #tpu.memory_space<vmem>>, %arg4: memref<8x256xf32, #tpu.memory_space<vmem>>) attributes {dimension_semantics = [#tpu.dimension_semantics<parallel>], iteration_bounds = array<i64: 1>, scalar_prefetch = 0 : i64, scratch_operands = 0 : i64, tpu.core_type = #tpu.core_type<tc>, window_params = [{transform_indices = @transform_0, window_bounds = array<i64: 8, 256>}, {transform_indices = @transform_1, window_bounds = array<i64: 8, 1>}, {transform_indices = @transform_2, window_bounds = array<i64: 8, 1>}, {transform_indices = @transform_3, window_bounds = array<i64: 8, 256>}]} {
    %c0 = arith.constant 0 : index
    %c0_0 = arith.constant 0 : index
    %0 = vector.load %arg1[%c0, %c0_0] : memref<8x256xf32, #tpu.memory_space<vmem>>, vector<8x256xf32>
    %cst = arith.constant dense<0.000000e+00> : vector<8xf32>
    %1 = vector.multi_reduction <add>, %0, %cst [1] : vector<8x256xf32> to vector<8xf32>
    %2 = vector.shape_cast %1 : vector<8xf32> to vector<8x1xf32>
    %3 = arith.mulf %0, %0 : vector<8x256xf32>
    %cst_1 = arith.constant dense<0.000000e+00> : vector<8xf32>
    %4 = vector.multi_reduction <add>, %3, %cst_1 [1] : vector<8x256xf32> to vector<8xf32>
    %5 = vector.shape_cast %4 : vector<8xf32> to vector<8x1xf32>
    %cst_2 = arith.constant 3.906250e-03 : f32
    %6 = vector.broadcast %cst_2 : f32 to vector<8x1xf32>
    %7 = arith.mulf %2, %6 : vector<8x1xf32>
    %cst_3 = arith.constant 3.906250e-03 : f32
    %8 = vector.broadcast %cst_3 : f32 to vector<8x1xf32>
    %9 = arith.mulf %5, %8 : vector<8x1xf32>
    %10 = arith.mulf %7, %7 : vector<8x1xf32>
    %11 = arith.subf %9, %10 : vector<8x1xf32>
    %cst_4 = arith.constant 0.000000e+00 : f32
    %12 = vector.broadcast %cst_4 : f32 to vector<8x1xf32>
    %13 = arith.maximumf %11, %12 : vector<8x1xf32>
    %cst_5 = arith.constant 9.99999974E-6 : f32
    %14 = vector.broadcast %cst_5 : f32 to vector<8x1xf32>
    %15 = arith.addf %13, %14 : vector<8x1xf32>
    %16 = math.rsqrt %15 : vector<8x1xf32>
    %c0_6 = arith.constant 0 : index
    %c0_7 = arith.constant 0 : index
    %17 = vector.load %arg2[%c0_6, %c0_7] : memref<8x1xf32, #tpu.memory_space<vmem>>, vector<8x1xf32>
    %18 = arith.mulf %17, %16 : vector<8x1xf32>
    %19 = vector.broadcast %7 : vector<8x1xf32> to vector<8x256xf32>
    %20 = arith.subf %0, %19 : vector<8x256xf32>
    %21 = vector.broadcast %18 : vector<8x1xf32> to vector<8x256xf32>
    %22 = arith.mulf %20, %21 : vector<8x256xf32>
    %c0_8 = arith.constant 0 : index
    %c0_9 = arith.constant 0 : index
    %23 = vector.load %arg3[%c0_8, %c0_9] : memref<8x1xf32, #tpu.memory_space<vmem>>, vector<8x1xf32>
    %24 = vector.broadcast %23 : vector<8x1xf32> to vector<8x256xf32>
    %25 = arith.addf %22, %24 : vector<8x256xf32>
    %c0_10 = arith.constant 0 : index
    %c0_11 = arith.constant 0 : index
    %26 = vector.load %arg4[%c0_10, %c0_11] : memref<8x256xf32, #tpu.memory_space<vmem>>, vector<8x256xf32>
    tpu.vector_store %arg4[%c0_10, %c0_11], %25 {strides = array<i32>} : memref<8x256xf32, #tpu.memory_space<vmem>>, vector<8x256xf32>,
    return
  }
  func.func @transform_0(%arg0: i32) -> (i32, i32) {
    %c0_i32 = arith.constant 0 : i32
    %c0_i32_0 = arith.constant 0 : i32
    return %arg0, %c0_i32 : i32, i32
  }
  func.func @transform_1(%arg0: i32) -> (i32, i32) {
    %c0_i32 = arith.constant 0 : i32
    %c0_i32_0 = arith.constant 0 : i32
    return %arg0, %c0_i32 : i32, i32
  }
  func.func @transform_2(%arg0: i32) -> (i32, i32) {
    %c0_i32 = arith.constant 0 : i32
    %c0_i32_0 = arith.constant 0 : i32
    return %arg0, %c0_i32 : i32, i32
  }
  func.func @transform_3(%arg0: i32) -> (i32, i32) {
    %c0_i32 = arith.constant 0 : i32
    %c0_i32_0 = arith.constant 0 : i32
    return %arg0, %c0_i32 : i32, i32
  }
}

</mosaic_0001>

<llo_original>
// kernel: tpu_custom_call.1
$region0: #{tpu_custom_call.1}
  #allocation0 [shape = 'u32[]', space=smem, size = 0x4, offset = 0x4, fixed_abs, tag = 'smem constant byte address 0x4 - core index']
  #allocation1 [shape = 'u32[72,128]{1,0:T(1,128)}', space=vmem, size = 0x9000, scoped, tag = 'internal scratch']
  %s0 = inlined_call_operand.vmem [shape: f32[8,256], index: 0, kind: input, shape index: {}]
  %s1 = inlined_call_operand.vmem [shape: f32[8,1], index: 1, kind: input, shape index: {}]
  %s2 = inlined_call_operand.vmem [shape: f32[8,1], index: 2, kind: input, shape index: {}]
  %s3 = inlined_call_operand.hbm [shape: f32[8,256], index: 3, kind: output, shape index: {}]
  %s4 = sld [smem:[#allocation0]]
  $region22: #{tpu_custom_call.1} parent=0
    _
  %s6 = ssub.s32 1, %s4
  %s7 = scalar_select 0, %s6, %s4
  $region1: #{tpu_custom_call.1} parent=0
    #allocation2 [shape = 'u8[8192]{0}', space=vmem, size = 0x2000, scoped, tag = 'output window, operand 0, single buffered']
    #allocation3 [shape = 's32[1]{0}', space=sflag, size = 0x4, scoped, tag = 'scoped memory for tpu_custom_call.1']
    %8 = vsyncpa [#allocation3], 0
    // Predicated region
    $region2: #{tpu_custom_call.1} parent=1 // pred_check
      _
    $region3: #{tpu_custom_call.1} parent=1 // pred_check_branch
      %10 = sbr.rel (0) target = $region5
    $region4: #{tpu_custom_call.1} parent=1 // pred_region
      _
    $region5: #{tpu_custom_call.1} parent=1 // pred_fallthru
      _
    // Predicated region
    $region6: #{tpu_custom_call.1} parent=1 // pred_check
      _
    $region7: #{tpu_custom_call.1} parent=1 // pred_check_branch
      %12 = sbr.rel (0) target = $region9
    $region8: #{tpu_custom_call.1} parent=1 // pred_region
      _
    $region9: #{tpu_custom_call.1} parent=1 // pred_fallthru
      _
    // Predicated region
    $region10: #{tpu_custom_call.1} parent=1 // pred_check
      _
    $region11: #{tpu_custom_call.1} parent=1 // pred_check_branch
      %14 = sbr.rel (0) target = $region13
    $region12: #{tpu_custom_call.1} parent=1 // pred_region
      _
    $region13: #{tpu_custom_call.1} parent=1 // pred_fallthru
      _
    %v15 = vld [vmem:[%s0] sm:$0xff]
    %v16 = vld [vmem:[%s0 + $0x8] sm:$0xff]
    %v17 = vadd.f32 %v15, %v16
    %18 = vadd.xlane.f32.xlu0 %v17
    %v19 = vpop.xlane.xlu0 %18
    %v20 = vmul.f32 %v15, %v15
    %v21 = vmul.f32 %v16, %v16
    %v22 = vadd.f32 %v20, %v21
    %23 = vadd.xlane.f32.xlu0 %v22
    %v24 = vpop.xlane.xlu0 %23
    %v25 = vmul.f32 %v19, 0.00390625
    %v26 = vmul.f32 %v24, 0.00390625
    %v27 = vmul.f32 %v25, %v25
    %v28 = vsub.f32 %v26, %v27
    %v29 = vmax.f32 %v28, 0.0
    %v30 = vadd.f32 %v29, 1e-05
    %v31 = vrsqrt.pop %v30
    %v32 = vmul.f32 %v31, %v30
    %v33 = vmul.f32 %v32, %v31
    %v34 = vmul.f32 0.5, %v33
    %v35 = vsub.f32 1.5, %v34
    %v36 = vmul.f32 %v31, %v35
    %vm37 = vweird.f32 %v30
    %vm38 = vweird.f32 %v31
    %vm39 = vmor %vm37, %vm38
    %v40 = vsel %vm39, %v31, %v36
    %v41 = vld [vmem:[%s1] sm:$0xff]
    %v42 = vmul.f32 %v41, %v40
    %v43 = vsub.f32 %v15, %v25
    %v44 = vsub.f32 %v16, %v25
    %46 = vset.pattern.permute.xlu0 0
    %47 = vperm.xlu0 %46, %v42
    %v48 = vpop.permute.xlu0 %47
    %v50 = vmul.f32 %v43, %v48
    %v51 = vmul.f32 %v44, %v48
    %v52 = vld [vmem:[%s2] sm:$0xff]
    %54 = vset.pattern.permute.xlu0 0
    %55 = vperm.xlu0 %54, %v52
    %v56 = vpop.permute.xlu0 %55
    %v58 = vadd.f32 %v50, %v56
    %v59 = vadd.f32 %v51, %v56
    %60 = vst [vmem:[#allocation2] sm:$0xff] %v58
    %61 = vst [vmem:[#allocation2 + $0x8] sm:$0xff] %v59
    // Predicated region
    $region14: #{tpu_custom_call.1} parent=1 // pred_check
      _
    $region15: #{tpu_custom_call.1} parent=1 // pred_check_branch
      %63 = sbr.rel (0) target = $region17
    $region16: #{tpu_custom_call.1} parent=1 // pred_region
      %65 = vsyncadd [#allocation3], 0
      %s67 = sshll.u32 [#allocation2], 4
      %s68 = int_to_ptr.vmem [resolvable:$true] %s67
      %s69 = sshll.u32 %s3, 4
      %s70 = int_to_ptr.hbm [resolvable:$true] %s69
      %72 = dma.vmem_to_hbm [thread:$0]  %s68, 256, %s70, [#allocation3]
    $region17: #{tpu_custom_call.1} parent=1 // pred_fallthru
      _
    // Predicated region
    $region18: #{tpu_custom_call.1} parent=1 // pred_check
      _
    $region19: #{tpu_custom_call.1} parent=1 // pred_check_branch
      %74 = sbr.rel (0) target = $region21
    $region20: #{tpu_custom_call.1} parent=1 // pred_region
      %76 = dma.done [#allocation3], 256
    $region21: #{tpu_custom_call.1} parent=1 // pred_fallthru
      _
    %77 = vsyncpa [#allocation3], 1

</llo_original>
